<compile_context>
chip_gen: v7x
topology: tpu7x:2x2x1
jax: 0.10.0
libtpu: 0.0.40
codegen_flags: <defaults>
</compile_context>

<pallas_src>
import math
from functools import partial

import jax
import jax.numpy as jnp
from jax import lax
from jax.experimental import pallas as pl
from jax.experimental.pallas import tpu as pltpu


# ---------------------------------------------------------------------------
# pixel_shuffle: pure data movement, kept in plain JAX (mirrors torch ops 1:1)
# ---------------------------------------------------------------------------
def pixel_shuffle(input_tensor: jax.Array, shuffle_ratio: float) -> jax.Array:
    batch_size, num_patches, channels = input_tensor.shape
    patch_size = int(math.sqrt(num_patches))
    x = input_tensor.reshape(batch_size, patch_size, patch_size, -1)
    _, height, width, channels = x.shape
    x = x.reshape(batch_size, height, int(width * shuffle_ratio),
                  int(channels / shuffle_ratio))
    x = jnp.transpose(x, (0, 2, 1, 3))
    x = x.reshape(batch_size, int(height * shuffle_ratio),
                  int(width * shuffle_ratio),
                  int(channels / (shuffle_ratio ** 2)))
    x = jnp.transpose(x, (0, 2, 1, 3))
    return x.reshape(batch_size, -1, x.shape[-1])


# ---------------------------------------------------------------------------
# Fused MLP kernel: fc1 + GELU + fc2 + bias + GELU (output_activation=True)
# Grid: (m, k) where k tiles the hidden (projector_input_dim) axis.
# ---------------------------------------------------------------------------
_INV_SQRT2 = 0.7071067811865476


def _gelu_exact(x):
    # matches torch nn.GELU() default (erf-based, approximate='none')
    return 0.5 * x * (1.0 + lax.erf(x * _INV_SQRT2))


def _mlp_kernel(x_ref, w1_ref, b1_ref, w2_ref, b2_ref, o_ref, acc_ref):
    k = pl.program_id(1)
    nk = pl.num_programs(1)

    # fc1 slice: (tile_m, D_in) @ (D_in, tile_h) -> f32, bias + GELU in f32
    h = jnp.dot(x_ref[...], w1_ref[...], preferred_element_type=jnp.float32)
    h = _gelu_exact(h + b1_ref[...])          # (1, tile_h) broadcasts over rows

    # partial fc2: (tile_m, tile_h) @ (tile_h, D_out), accumulate in f32
    partial_y = jnp.dot(h.astype(w2_ref.dtype), w2_ref[...],
                        preferred_element_type=jnp.float32)

    @pl.when(k == 0)
    def _():
        acc_ref[...] = jnp.zeros_like(acc_ref)

    acc_ref[...] += partial_y

    @pl.when(k == nk - 1)
    def _():
        y = acc_ref[...] + b2_ref[...]
        o_ref[...] = _gelu_exact(y).astype(o_ref.dtype)   # output_activation=True


def _round_up(x: int, m: int) -> int:
    return ((x + m - 1) // m) * m


def llama4_vision_mlp(x, w1, b1, w2, b2, *, tile_m=512, tile_h=512,
                      matmul_dtype=jnp.bfloat16):
    """x: (M, D_in). Weights stored (in_dim, out_dim). Returns (M, D_out) f32."""
    M, D_in = x.shape
    H = w1.shape[1]
    D_out = w2.shape[1]

    # Adaptive tiles: big tiles for production token counts, clamped so small
    # inputs aren't mostly padding; prefer >=2 M tiles so the "parallel" M
    # axis can be sharded across v7x's two TensorCores.
    tile_m_eff = min(tile_m, max(8, _round_up(pl.cdiv(M, 2), 8)))
    tile_h_eff = min(tile_h, _round_up(H, 128))

    M_pad = _round_up(M, tile_m_eff)
    H_pad = _round_up(H, tile_h_eff)

    x_p = x if M_pad == M else jnp.pad(x, ((0, M_pad - M), (0, 0)))
    w1_p, b1_p, w2_p = w1, b1, w2
    if H_pad != H:
        # zero-padded hidden columns give gelu(0)=0, and the matching zero
        # rows of w2 contribute 0 to the output -> padding is exact.
        w1_p = jnp.pad(w1, ((0, 0), (0, H_pad - H)))
        b1_p = jnp.pad(b1, ((0, 0), (0, H_pad - H)))
        w2_p = jnp.pad(w2, ((0, H_pad - H), (0, 0)))

    # bf16 MXU inputs (v6e/v7x native, halves weight DMA/VMEM); accumulation,
    # bias and GELU remain f32 inside the kernel.
    x_p = x_p.astype(matmul_dtype)
    w1_p = w1_p.astype(matmul_dtype)
    w2_p = w2_p.astype(matmul_dtype)
    b1_p = b1_p.astype(jnp.float32)
    b2_p = b2.astype(jnp.float32)

    grid = (M_pad // tile_m_eff, H_pad // tile_h_eff)

    bytes_per = jnp.dtype(matmul_dtype).itemsize
    cost = pl.CostEstimate(
        flops=2 * M * (D_in * H + H * D_out),
        transcendentals=M * (H + D_out),
        bytes_accessed=(M_pad * D_in * bytes_per
                        + D_in * H_pad * bytes_per
                        + H_pad * D_out * bytes_per
                        + (H_pad + D_out) * 4
                        + M_pad * D_out * 4))

    out = pl.pallas_call(
        _mlp_kernel,
        out_shape=jax.ShapeDtypeStruct((M_pad, D_out), jnp.float32),
        grid_spec=pltpu.PrefetchScalarGridSpec(
            num_scalar_prefetch=0,
            grid=grid,
            in_specs=[
                pl.BlockSpec((tile_m_eff, D_in), lambda m, k: (m, 0)),   # x
                pl.BlockSpec((D_in, tile_h_eff), lambda m, k: (0, k)),   # w1
                pl.BlockSpec((1, tile_h_eff), lambda m, k: (0, k)),      # b1
                pl.BlockSpec((tile_h_eff, D_out), lambda m, k: (k, 0)),  # w2
                pl.BlockSpec((1, D_out), lambda m, k: (0, 0)),           # b2
            ],
            out_specs=pl.BlockSpec((tile_m_eff, D_out), lambda m, k: (m, 0)),
            scratch_shapes=[pltpu.VMEM((tile_m_eff, D_out), jnp.float32)],
        ),
        compiler_params=pltpu.CompilerParams(
            dimension_semantics=("parallel", "arbitrary"),
            vmem_limit_bytes=64 * 1024 * 1024),
        cost_estimate=cost,
    )(x_p, w1_p, b1_p, w2_p, b2_p)

    if M_pad != M:
        out = out[:M]
    return out


# ---------------------------------------------------------------------------
# Module wrapper: Llama4VisionPixelShuffleMLP.forward
# ---------------------------------------------------------------------------
def llama4_vision_pixel_shuffle_mlp(encoded_patches, params,
                                    pixel_shuffle_ratio):
    x = pixel_shuffle(encoded_patches, pixel_shuffle_ratio)   # (B, P', C')
    B, P, C = x.shape
    x_flat = x.reshape(B * P, C)
    y_flat = llama4_vision_mlp(x_flat, params["w1"], params["b1"],
                               params["w2"], params["b2"])
    return y_flat.reshape(B, P, -1)


# ---------------------------------------------------------------------------
# Pure-JAX f32 reference (HIGHEST precision dots) for correctness check
# ---------------------------------------------------------------------------
def _reference(encoded_patches, params, ratio):
    x = pixel_shuffle(encoded_patches, ratio)
    hp = lax.Precision.HIGHEST
    h = jnp.dot(x, params["w1"], precision=hp) + params["b1"][0]
    h = 0.5 * h * (1.0 + lax.erf(h * _INV_SQRT2))
    y = jnp.dot(h, params["w2"], precision=hp) + params["b2"][0]
    y = 0.5 * y * (1.0 + lax.erf(y * _INV_SQRT2))
    return y


if __name__ == "__main__":
    # config (small, consistent with the module)
    pixel_shuffle_ratio = 0.5
    batch = 2
    num_patches = 16          # patch grid 4x4
    channels = 32             # vision hidden size
    intermediate_size = int(channels / pixel_shuffle_ratio ** 2)  # 128
    projector_input_dim = 128
    projector_output_dim = 128

    key = jax.random.PRNGKey(0)
    k_x, k_w1, k_b1, k_w2, k_b2 = jax.random.split(key, 5)

    encoded_patches = jax.random.normal(
        k_x, (batch, num_patches, channels), dtype=jnp.float32)

    params = {
        "w1": jax.random.normal(
            k_w1, (intermediate_size, projector_input_dim),
            dtype=jnp.float32) * 0.05,
        "b1": jax.random.normal(
            k_b1, (1, projector_input_dim), dtype=jnp.float32) * 0.05,
        "w2": jax.random.normal(
            k_w2, (projector_input_dim, projector_output_dim),
            dtype=jnp.float32) * 0.05,
        "b2": jax.random.normal(
            k_b2, (1, projector_output_dim), dtype=jnp.float32) * 0.05,
    }

    out = llama4_vision_pixel_shuffle_mlp(
        encoded_patches, params, pixel_shuffle_ratio)
    out = jax.block_until_ready(out)

    ref = _reference(encoded_patches, params, pixel_shuffle_ratio)
    assert out.shape == (batch,
                         int(num_patches * pixel_shuffle_ratio ** 2),
                         projector_output_dim)
    # bf16 matmul inputs -> relaxed tolerance vs the f32 reference.
    assert jnp.allclose(out, ref, atol=2e-2, rtol=2e-2), (
        float(jnp.max(jnp.abs(out - ref))))

    print("KERNEL_OK")
</pallas_src>

<mosaic_0001>
module attributes {stable_mosaic.version = 11 : i64} {
  func.func @_mlp_kernel(%arg0: i32, %arg1: i32, %arg2: memref<8x128xbf16, #tpu.memory_space<vmem>>, %arg3: memref<128x128xbf16, #tpu.memory_space<vmem>>, %arg4: memref<1x128xf32, #tpu.memory_space<vmem>>, %arg5: memref<128x128xbf16, #tpu.memory_space<vmem>>, %arg6: memref<1x128xf32, #tpu.memory_space<vmem>>, %arg7: memref<8x128xf32, #tpu.memory_space<vmem>>, %arg8: memref<8x128xf32, #tpu.memory_space<vmem>>) attributes {dimension_semantics = [#tpu.dimension_semantics<parallel>, #tpu.dimension_semantics<arbitrary>], iteration_bounds = array<i64: 1, 1>, scalar_prefetch = 0 : i64, scratch_operands = 1 : i64, tpu.core_type = #tpu.core_type<tc>, window_params = [{transform_indices = @transform_0, window_bounds = array<i64: 8, 128>}, {transform_indices = @transform_1, window_bounds = array<i64: 128, 128>}, {transform_indices = @transform_2, window_bounds = array<i64: 1, 128>}, {transform_indices = @transform_3, window_bounds = array<i64: 128, 128>}, {pipeline_mode = #tpu.pipeline_mode<synchronous>, transform_indices = @transform_4, window_bounds = array<i64: 1, 128>}, {transform_indices = @transform_5, window_bounds = array<i64: 8, 128>}]} {
    %c0 = arith.constant 0 : index
    %c0_0 = arith.constant 0 : index
    %0 = vector.load %arg2[%c0, %c0_0] : memref<8x128xbf16, #tpu.memory_space<vmem>>, vector<8x128xbf16>
    %c0_1 = arith.constant 0 : index
    %c0_2 = arith.constant 0 : index
    %1 = vector.load %arg3[%c0_1, %c0_2] : memref<128x128xbf16, #tpu.memory_space<vmem>>, vector<128x128xbf16>
    %cst = arith.constant dense<0.000000e+00> : vector<8x128xf32>
    %2 = tpu.matmul %0, %1, %cst {dimension_numbers = #tpu.dot_dimension_numbers<[1], [0], [0], [1], [0, 0, 1, 1], [], []>} : vector<8x128xbf16>, vector<128x128xbf16>, vector<8x128xf32> -> vector<8x128xf32>
    %c0_3 = arith.constant 0 : index
    %c0_4 = arith.constant 0 : index
    %3 = vector.load %arg4[%c0_3, %c0_4] : memref<1x128xf32, #tpu.memory_space<vmem>>, vector<1x128xf32>
    %4 = vector.broadcast %3 : vector<1x128xf32> to vector<8x128xf32>
    %5 = arith.addf %2, %4 : vector<8x128xf32>
    %cst_5 = arith.constant 5.000000e-01 : f32
    %6 = vector.broadcast %cst_5 : f32 to vector<8x128xf32>
    %7 = arith.mulf %6, %5 : vector<8x128xf32>
    %cst_6 = arith.constant 0.707106769 : f32
    %8 = vector.broadcast %cst_6 : f32 to vector<8x128xf32>
    %9 = arith.mulf %5, %8 : vector<8x128xf32>
    %10 = math.erf %9 : vector<8x128xf32>
    %cst_7 = arith.constant 1.000000e+00 : f32
    %11 = vector.broadcast %cst_7 : f32 to vector<8x128xf32>
    %12 = arith.addf %11, %10 : vector<8x128xf32>
    %13 = arith.mulf %7, %12 : vector<8x128xf32>
    %14 = arith.truncf %13 : vector<8x128xf32> to vector<8x128xbf16>
    %c0_8 = arith.constant 0 : index
    %c0_9 = arith.constant 0 : index
    %15 = vector.load %arg5[%c0_8, %c0_9] : memref<128x128xbf16, #tpu.memory_space<vmem>>, vector<128x128xbf16>
    %cst_10 = arith.constant dense<0.000000e+00> : vector<8x128xf32>
    %16 = tpu.matmul %14, %15, %cst_10 {dimension_numbers = #tpu.dot_dimension_numbers<[1], [0], [0], [1], [0, 0, 1, 1], [], []>} : vector<8x128xbf16>, vector<128x128xbf16>, vector<8x128xf32> -> vector<8x128xf32>
    %c0_i32 = arith.constant 0 : i32
    %17 = arith.cmpi eq, %arg1, %c0_i32 : i32
    %18 = arith.extui %17 : i1 to i32
    %c0_i32_11 = arith.constant 0 : i32
    %19 = arith.cmpi ne, %18, %c0_i32_11 : i32
    scf.if %19 {
      %cst_18 = arith.constant 0.000000e+00 : f32
      %26 = vector.broadcast %cst_18 : f32 to vector<8x128xf32>
      %c0_19 = arith.constant 0 : index
      %c0_20 = arith.constant 0 : index
      %27 = vector.load %arg8[%c0_19, %c0_20] : memref<8x128xf32, #tpu.memory_space<vmem>>, vector<8x128xf32>
      tpu.vector_store %arg8[%c0_19, %c0_20], %26 {strides = array<i32>} : memref<8x128xf32, #tpu.memory_space<vmem>>, vector<8x128xf32>,
    } else {
    }
    %c0_12 = arith.constant 0 : index
    %c0_13 = arith.constant 0 : index
    %20 = vector.load %arg8[%c0_12, %c0_13] : memref<8x128xf32, #tpu.memory_space<vmem>>, vector<8x128xf32>
    %21 = arith.addf %20, %16 : vector<8x128xf32>
    %c0_14 = arith.constant 0 : index
    %c0_15 = arith.constant 0 : index
    %22 = vector.load %arg8[%c0_14, %c0_15] : memref<8x128xf32, #tpu.memory_space<vmem>>, vector<8x128xf32>
    tpu.vector_store %arg8[%c0_14, %c0_15], %21 {strides = array<i32>} : memref<8x128xf32, #tpu.memory_space<vmem>>, vector<8x128xf32>,
    %c0_i32_16 = arith.constant 0 : i32
    %23 = arith.cmpi eq, %arg1, %c0_i32_16 : i32
    %24 = arith.extui %23 : i1 to i32
    %c0_i32_17 = arith.constant 0 : i32
    %25 = arith.cmpi ne, %24, %c0_i32_17 : i32
    scf.if %25 {
      %c0_18 = arith.constant 0 : index
      %c0_19 = arith.constant 0 : index
      %26 = vector.load %arg8[%c0_18, %c0_19] : memref<8x128xf32, #tpu.memory_space<vmem>>, vector<8x128xf32>
      %c0_20 = arith.constant 0 : index
      %c0_21 = arith.constant 0 : index
      %27 = vector.load %arg6[%c0_20, %c0_21] : memref<1x128xf32, #tpu.memory_space<vmem>>, vector<1x128xf32>
      %28 = vector.broadcast %27 : vector<1x128xf32> to vector<8x128xf32>
      %29 = arith.addf %26, %28 : vector<8x128xf32>
      %cst_22 = arith.constant 5.000000e-01 : f32
      %30 = vector.broadcast %cst_22 : f32 to vector<8x128xf32>
      %31 = arith.mulf %30, %29 : vector<8x128xf32>
      %cst_23 = arith.constant 0.707106769 : f32
      %32 = vector.broadcast %cst_23 : f32 to vector<8x128xf32>
      %33 = arith.mulf %29, %32 : vector<8x128xf32>
      %34 = math.erf %33 : vector<8x128xf32>
      %cst_24 = arith.constant 1.000000e+00 : f32
      %35 = vector.broadcast %cst_24 : f32 to vector<8x128xf32>
      %36 = arith.addf %35, %34 : vector<8x128xf32>
      %37 = arith.mulf %31, %36 : vector<8x128xf32>
      %c0_25 = arith.constant 0 : index
      %c0_26 = arith.constant 0 : index
      %38 = vector.load %arg7[%c0_25, %c0_26] : memref<8x128xf32, #tpu.memory_space<vmem>>, vector<8x128xf32>
      tpu.vector_store %arg7[%c0_25, %c0_26], %37 {strides = array<i32>} : memref<8x128xf32, #tpu.memory_space<vmem>>, vector<8x128xf32>,
    } else {
    }
    return
  }
  func.func @transform_0(%arg0: i32, %arg1: i32) -> (i32, i32) {
    %c0_i32 = arith.constant 0 : i32
    %c0_i32_0 = arith.constant 0 : i32
    return %arg0, %c0_i32 : i32, i32
  }
  func.func @transform_1(%arg0: i32, %arg1: i32) -> (i32, i32) {
    %c0_i32 = arith.constant 0 : i32
    %c0_i32_0 = arith.constant 0 : i32
    return %c0_i32, %arg1 : i32, i32
  }
  func.func @transform_2(%arg0: i32, %arg1: i32) -> (i32, i32) {
    %c0_i32 = arith.constant 0 : i32
    %c0_i32_0 = arith.constant 0 : i32
    return %c0_i32, %arg1 : i32, i32
  }
  func.func @transform_3(%arg0: i32, %arg1: i32) -> (i32, i32) {
    %c0_i32 = arith.constant 0 : i32
    %c0_i32_0 = arith.constant 0 : i32
    return %arg1, %c0_i32 : i32, i32
  }
  func.func @transform_4(%arg0: i32, %arg1: i32) -> (i32, i32) {
    %c0_i32 = arith.constant 0 : i32
    %c0_i32_0 = arith.constant 0 : i32
    %c0_i32_1 = arith.constant 0 : i32
    return %c0_i32, %c0_i32_0 : i32, i32
  }
  func.func @transform_5(%arg0: i32, %arg1: i32) -> (i32, i32) {
    %c0_i32 = arith.constant 0 : i32
    %c0_i32_0 = arith.constant 0 : i32
    return %arg0, %c0_i32 : i32, i32
  }
}

</mosaic_0001>

<llo_original>
// kernel: tpu_custom_call.1
$region0: #{tpu_custom_call.1}
  #allocation0 [shape = 'u32[]', space=smem, size = 0x4, offset = 0x4, fixed_abs, tag = 'smem constant byte address 0x4 - core index']
  #allocation1 [shape = 'u32[144,128]{1,0:T(1,128)}', space=vmem, size = 0x12000, scoped, tag = 'internal scratch']
  #allocation2 [shape = 'f32[8,128]{1,0:T(8,128)}', space=vmem, size = 0x1000, scoped, tag = 'scratch operand']
  %s0 = inlined_call_operand.hbm [shape: bf16[8,128], index: 0, kind: input, shape index: {}]
  %s1 = inlined_call_operand.hbm [shape: bf16[128,128], index: 1, kind: input, shape index: {}]
  %s2 = inlined_call_operand.hbm [shape: f32[1,128], index: 2, kind: input, shape index: {}]
  %s3 = inlined_call_operand.hbm [shape: bf16[128,128], index: 3, kind: input, shape index: {}]
  %s4 = inlined_call_operand.hbm [shape: f32[1,128], index: 4, kind: input, shape index: {}]
  %s5 = inlined_call_operand.hbm [shape: f32[8,128], index: 5, kind: output, shape index: {}]
  %s6 = sld [smem:[#allocation0]]
  $region58: #{tpu_custom_call.1} parent=0
    _
  %s8 = ssub.s32 1, %s6
  %s9 = scalar_select 0, %s8, %s6
  $region1: #{tpu_custom_call.1} parent=0
    #allocation3 [shape = 'u8[2048]{0}', space=vmem, size = 0x800, scoped, tag = 'input window, operand 0, single buffered']
    #allocation4 [shape = 's32[1]{0}', space=sflag, size = 0x4, scoped, tag = 'scoped memory for tpu_custom_call.1']
    #allocation5 [shape = 's32[1]{0}', space=sflag, size = 0x4, scoped, tag = 'scoped memory for tpu_custom_call.1']
    #allocation6 [shape = 'u8[32768]{0}', space=vmem, size = 0x8000, scoped, tag = 'input window, operand 1, single buffered']
    #allocation7 [shape = 's32[1]{0}', space=sflag, size = 0x4, scoped, tag = 'scoped memory for tpu_custom_call.1']
    #allocation8 [shape = 'u8[512]{0}', space=vmem, size = 0x400, scoped, tag = 'input window, operand 2, single buffered']
    #allocation9 [shape = 'u8[32768]{0}', space=vmem, size = 0x8000, scoped, tag = 'input window, operand 3, single buffered']
    #allocation10 [shape = 's32[1]{0}', space=sflag, size = 0x4, scoped, tag = 'scoped memory for tpu_custom_call.1']
    #allocation11 [shape = 'u8[512]{0}', space=vmem, size = 0x400, scoped, tag = 'input window, operand 4, single buffered']
    #allocation12 [shape = 'u8[4096]{0}', space=vmem, size = 0x1000, scoped, tag = 'output window, operand 0, single buffered']
    %10 = vsyncpa [#allocation4], 0
    %11 = vsyncpa [#allocation7], 0
    %12 = vsyncpa [#allocation10], 0
    %13 = vsyncpa [#allocation5], 0
    // Predicated region
    $region2: #{tpu_custom_call.1} parent=1 // pred_check
      _
    $region3: #{tpu_custom_call.1} parent=1 // pred_check_branch
      %15 = sbr.rel (0) target = $region5
    $region4: #{tpu_custom_call.1} parent=1 // pred_region
      %s17 = ssub.s32 64, 64
      %18 = vsyncadd [#allocation4], %s17
      %s20 = sshll.u32 [#allocation3], 4
      %s21 = int_to_ptr.vmem [resolvable:$true] %s20
      %23 = dma.hbm_to_vmem [thread:$0]  %s0, 64, %s21, [#allocation4]
    $region5: #{tpu_custom_call.1} parent=1 // pred_fallthru
      _
    // Predicated region
    $region6: #{tpu_custom_call.1} parent=1 // pred_check
      _
    $region7: #{tpu_custom_call.1} parent=1 // pred_check_branch
      %25 = sbr.rel (0) target = $region9
    $region8: #{tpu_custom_call.1} parent=1 // pred_region
      %s27 = ssub.s32 1024, 1024
      %28 = vsyncadd [#allocation7], %s27
      %s29 = sshll.u32 [#allocation6], 4
      %s30 = int_to_ptr.vmem [resolvable:$true] %s29
      %35 = dma.hbm_to_vmem [thread:$0]  %s1, 1024, %s30, [#allocation7], 64, 64, 4
    $region9: #{tpu_custom_call.1} parent=1 // pred_fallthru
      _
    // Predicated region
    $region10: #{tpu_custom_call.1} parent=1 // pred_check
      _
    $region11: #{tpu_custom_call.1} parent=1 // pred_check_branch
      %37 = sbr.rel (0) target = $region13
    $region12: #{tpu_custom_call.1} parent=1 // pred_region
      %s39 = ssub.s32 16, 16
      %40 = vsyncadd [#allocation7], %s39
      %s42 = sshll.u32 [#allocation8], 4
      %s43 = int_to_ptr.vmem [resolvable:$true] %s42
      %45 = dma.hbm_to_vmem [thread:$0]  %s2, 16, %s43, [#allocation7]
    $region13: #{tpu_custom_call.1} parent=1 // pred_fallthru
      _
    // Predicated region
    $region14: #{tpu_custom_call.1} parent=1 // pred_check
      _
    $region15: #{tpu_custom_call.1} parent=1 // pred_check_branch
      %47 = sbr.rel (0) target = $region17
    $region16: #{tpu_custom_call.1} parent=1 // pred_region
      %s49 = ssub.s32 1024, 1024
      %50 = vsyncadd [#allocation10], %s49
      %s51 = sshll.u32 [#allocation9], 4
      %s52 = int_to_ptr.vmem [resolvable:$true] %s51
      %57 = dma.hbm_to_vmem [thread:$0]  %s3, 1024, %s52, [#allocation10], 64, 64, 4
    $region17: #{tpu_custom_call.1} parent=1 // pred_fallthru
      _
    // Predicated region
    $region18: #{tpu_custom_call.1} parent=1 // pred_check
      _
    $region19: #{tpu_custom_call.1} parent=1 // pred_check_branch
      %59 = sbr.rel (0) target = $region21
    $region20: #{tpu_custom_call.1} parent=1 // pred_region
      %s61 = ssub.s32 16, 16
      %62 = vsyncadd [#allocation10], %s61
      %s64 = sshll.u32 [#allocation11], 4
      %s65 = int_to_ptr.vmem [resolvable:$true] %s64
      %67 = dma.hbm_to_vmem [thread:$0]  %s4, 16, %s65, [#allocation10]
    $region21: #{tpu_custom_call.1} parent=1 // pred_fallthru
      _
    // Predicated region
    $region22: #{tpu_custom_call.1} parent=1 // pred_check
      _
    $region23: #{tpu_custom_call.1} parent=1 // pred_check_branch
      %69 = sbr.rel (0) target = $region25
    $region24: #{tpu_custom_call.1} parent=1 // pred_region
      %70 = dma.done [#allocation4], 64
    $region25: #{tpu_custom_call.1} parent=1 // pred_fallthru
      _
    // Predicated region
    $region26: #{tpu_custom_call.1} parent=1 // pred_check
      _
    $region27: #{tpu_custom_call.1} parent=1 // pred_check_branch
      %72 = sbr.rel (0) target = $region29
    $region28: #{tpu_custom_call.1} parent=1 // pred_region
      %73 = dma.done [#allocation7], 1024
    $region29: #{tpu_custom_call.1} parent=1 // pred_fallthru
      _
    // Predicated region
    $region30: #{tpu_custom_call.1} parent=1 // pred_check
      _
    $region31: #{tpu_custom_call.1} parent=1 // pred_check_branch
      %75 = sbr.rel (0) target = $region33
    $region32: #{tpu_custom_call.1} parent=1 // pred_region
      %76 = dma.done [#allocation7], 16
    $region33: #{tpu_custom_call.1} parent=1 // pred_fallthru
      _
    // Predicated region
    $region34: #{tpu_custom_call.1} parent=1 // pred_check
      _
    $region35: #{tpu_custom_call.1} parent=1 // pred_check_branch
      %78 = sbr.rel (0) target = $region37
    $region36: #{tpu_custom_call.1} parent=1 // pred_region
      %79 = dma.done [#allocation10], 1024
    $region37: #{tpu_custom_call.1} parent=1 // pred_fallthru
      _
    // Predicated region
    $region38: #{tpu_custom_call.1} parent=1 // pred_check
      _
    $region39: #{tpu_custom_call.1} parent=1 // pred_check_branch
      %81 = sbr.rel (0) target = $region41
    $region40: #{tpu_custom_call.1} parent=1 // pred_region
      %82 = dma.done [#allocation10], 16
    $region41: #{tpu_custom_call.1} parent=1 // pred_fallthru
      _
    %v84 = vld [vmem:[#allocation3] sm:$0xf]
    %v85 = vld [vmem:[#allocation6] sm:$0xf]
    %v86 = vld [vmem:[#allocation6 + $0x4] sm:$0xf]
    %v87 = vld [vmem:[#allocation6 + $0x8] sm:$0xf]
    %v88 = vld [vmem:[#allocation6 + $0xc] sm:$0xf]
    %v89 = vld [vmem:[#allocation6 + $0x10] sm:$0xf]
    %v90 = vld [vmem:[#allocation6 + $0x14] sm:$0xf]
    %v91 = vld [vmem:[#allocation6 + $0x18] sm:$0xf]
    %v92 = vld [vmem:[#allocation6 + $0x1c] sm:$0xf]
    %v93 = vld [vmem:[#allocation6 + $0x20] sm:$0xf]
    %v94 = vld [vmem:[#allocation6 + $0x24] sm:$0xf]
    %v95 = vld [vmem:[#allocation6 + $0x28] sm:$0xf]
    %v96 = vld [vmem:[#allocation6 + $0x2c] sm:$0xf]
    %v97 = vld [vmem:[#allocation6 + $0x30] sm:$0xf]
    %v98 = vld [vmem:[#allocation6 + $0x34] sm:$0xf]
    %v99 = vld [vmem:[#allocation6 + $0x38] sm:$0xf]
    %v100 = vld [vmem:[#allocation6 + $0x3c] sm:$0xf]
    %v101 = vld [vmem:[#allocation8] sm:$0x1]
    %v103 = vlaneseq
    %v104 = vshrl.u32 %v103, 7
    %v105 = vsub.s32 0, %v104
    %v106 = vrot.slane %v101, %v105
    %v124 = vunpack.c.l.b16 %v85
    %v125 = vunpack.c.l.b16 %v86
    %v126 = vunpack.c.l.b16 %v87
    %v127 = vunpack.c.l.b16 %v88
    %v128 = vunpack.c.l.b16 %v89
    %v129 = vunpack.c.l.b16 %v90
    %v130 = vunpack.c.l.b16 %v91
    %v131 = vunpack.c.l.b16 %v92
    %v132 = vunpack.c.l.b16 %v93
    %v133 = vunpack.c.l.b16 %v94
    %v134 = vunpack.c.l.b16 %v95
    %v135 = vunpack.c.l.b16 %v96
    %v136 = vunpack.c.l.b16 %v97
    %v137 = vunpack.c.l.b16 %v98
    %v138 = vunpack.c.l.b16 %v99
    %v139 = vunpack.c.l.b16 %v100
    %v140 = vpack.c.b16 %v125, %v124
    %v141 = vpack.c.b16 %v127, %v126
    %v142 = vpack.c.b16 %v129, %v128
    %v143 = vpack.c.b16 %v131, %v130
    %v144 = vpack.c.b16 %v133, %v132
    %v145 = vpack.c.b16 %v135, %v134
    %v146 = vpack.c.b16 %v137, %v136
    %v147 = vpack.c.b16 %v139, %v138
    %156 = vmatprep.subr.bf16.mxu0 0
    %157 = vmatpush1.bf16.msra.mxu0 %v140
    %158 = vmatprep.subr.bf16.mxu0 0
    %159 = vmatpush1.bf16.msra.mxu0 %v141
    %160 = vmatprep.subr.bf16.mxu0 0
    %161 = vmatpush1.bf16.msra.mxu0 %v142
    %162 = vmatprep.subr.bf16.mxu0 0
    %163 = vmatpush1.bf16.msra.mxu0 %v143
    %164 = vmatprep.subr.bf16.mxu0 0
    %165 = vmatpush1.bf16.msra.mxu0 %v144
    %166 = vmatprep.subr.bf16.mxu0 0
    %167 = vmatpush1.bf16.msra.mxu0 %v145
    %168 = vmatprep.subr.bf16.mxu0 0
    %169 = vmatpush1.bf16.msra.mxu0 %v146
    %170 = vmatprep.subr.bf16.mxu0 0
    %171 = vmatpush1.bf16.msra.mxu0 %v147
    %172 = vmatprep.subr.bf16.mxu0 0
    %173 = vmatpush1.bf16.msra.mxu0 0
    %174 = vmatprep.subr.bf16.mxu0 0
    %175 = vmatpush1.bf16.msra.mxu0 0
    %176 = vmatprep.subr.bf16.mxu0 0
    %177 = vmatpush1.bf16.msra.mxu0 0
    %178 = vmatprep.subr.bf16.mxu0 0
    %179 = vmatpush1.bf16.msra.mxu0 0
    %180 = vmatprep.subr.bf16.mxu0 0
    %181 = vmatpush1.bf16.msra.mxu0 0
    %182 = vmatprep.subr.bf16.mxu0 0
    %183 = vmatpush1.bf16.msra.mxu0 0
    %184 = vmatprep.subr.bf16.mxu0 0
    %185 = vmatpush1.bf16.msra.mxu0 0
    %186 = vmatprep.subr.bf16.mxu0 0
    %187 = vmatpush1.bf16.msra.mxu0 0
    %188 = vmatprep.mubr.bf16.mxu0 0
    %189 = vmatmul.mubr.bf16.gmra.mrb[0].mxu0 %v84
    %v190 = vpop.f32.mrb[0].mxu0
    %v191 = vadd.f32 %v106, %v190
    %v192 = vpop.f32.mrb[0].mxu0
    %v193 = vpop.f32.mrb[0].mxu0
    %v194 = vpop.f32.mrb[0].mxu0
    %195 = vdwg.mxu0
    %v196 = vmul.f32 %v191, 0.5
    %v197 = vmul.f32 %v191, 0.70710677
    %v198 = verf.f32.pop %v197
    %v199 = vadd.f32 %v198, 1.0
    %v200 = vmul.f32 %v196, %v199
    %v201 = vpack.c.bf16 %v200, %v200
    %v202 = vld [vmem:[#allocation9] sm:$0xf]
    %v203 = vld [vmem:[#allocation9 + $0x4] sm:$0xf]
    %v204 = vld [vmem:[#allocation9 + $0x8] sm:$0xf]
    %v205 = vld [vmem:[#allocation9 + $0xc] sm:$0xf]
    %v206 = vld [vmem:[#allocation9 + $0x10] sm:$0xf]
    %v207 = vld [vmem:[#allocation9 + $0x14] sm:$0xf]
    %v208 = vld [vmem:[#allocation9 + $0x18] sm:$0xf]
    %v209 = vld [vmem:[#allocation9 + $0x1c] sm:$0xf]
    %v210 = vld [vmem:[#allocation9 + $0x20] sm:$0xf]
    %v211 = vld [vmem:[#allocation9 + $0x24] sm:$0xf]
    %v212 = vld [vmem:[#allocation9 + $0x28] sm:$0xf]
    %v213 = vld [vmem:[#allocation9 + $0x2c] sm:$0xf]
    %v214 = vld [vmem:[#allocation9 + $0x30] sm:$0xf]
    %v215 = vld [vmem:[#allocation9 + $0x34] sm:$0xf]
    %v216 = vld [vmem:[#allocation9 + $0x38] sm:$0xf]
    %v217 = vld [vmem:[#allocation9 + $0x3c] sm:$0xf]
    %v234 = vunpack.c.l.b16 %v202
    %v235 = vunpack.c.l.b16 %v203
    %v236 = vunpack.c.l.b16 %v204
    %v237 = vunpack.c.l.b16 %v205
    %v238 = vunpack.c.l.b16 %v206
    %v239 = vunpack.c.l.b16 %v207
    %v240 = vunpack.c.l.b16 %v208
    %v241 = vunpack.c.l.b16 %v209
    %v242 = vunpack.c.l.b16 %v210
    %v243 = vunpack.c.l.b16 %v211
    %v244 = vunpack.c.l.b16 %v212
    %v245 = vunpack.c.l.b16 %v213
    %v246 = vunpack.c.l.b16 %v214
    %v247 = vunpack.c.l.b16 %v215
    %v248 = vunpack.c.l.b16 %v216
    %v249 = vunpack.c.l.b16 %v217
    %v250 = vpack.c.b16 %v235, %v234
    %v251 = vpack.c.b16 %v237, %v236
    %v252 = vpack.c.b16 %v239, %v238
    %v253 = vpack.c.b16 %v241, %v240
    %v254 = vpack.c.b16 %v243, %v242
    %v255 = vpack.c.b16 %v245, %v244
    %v256 = vpack.c.b16 %v247, %v246
    %v257 = vpack.c.b16 %v249, %v248
    %266 = vmatprep.subr.bf16.mxu0 0
    %267 = vmatpush1.bf16.msra.mxu0 %v250
    %268 = vmatprep.subr.bf16.mxu0 0
    %269 = vmatpush1.bf16.msra.mxu0 %v251
    %270 = vmatprep.subr.bf16.mxu0 0
    %271 = vmatpush1.bf16.msra.mxu0 %v252
    %272 = vmatprep.subr.bf16.mxu0 0
    %273 = vmatpush1.bf16.msra.mxu0 %v253
    %274 = vmatprep.subr.bf16.mxu0 0
    %275 = vmatpush1.bf16.msra.mxu0 %v254
    %276 = vmatprep.subr.bf16.mxu0 0
    %277 = vmatpush1.bf16.msra.mxu0 %v255
    %278 = vmatprep.subr.bf16.mxu0 0
    %279 = vmatpush1.bf16.msra.mxu0 %v256
    %280 = vmatprep.subr.bf16.mxu0 0
    %281 = vmatpush1.bf16.msra.mxu0 %v257
    %282 = vmatprep.subr.bf16.mxu0 0
    %283 = vmatpush1.bf16.msra.mxu0 0
    %284 = vmatprep.subr.bf16.mxu0 0
    %285 = vmatpush1.bf16.msra.mxu0 0
    %286 = vmatprep.subr.bf16.mxu0 0
    %287 = vmatpush1.bf16.msra.mxu0 0
    %288 = vmatprep.subr.bf16.mxu0 0
    %289 = vmatpush1.bf16.msra.mxu0 0
    %290 = vmatprep.subr.bf16.mxu0 0
    %291 = vmatpush1.bf16.msra.mxu0 0
    %292 = vmatprep.subr.bf16.mxu0 0
    %293 = vmatpush1.bf16.msra.mxu0 0
    %294 = vmatprep.subr.bf16.mxu0 0
    %295 = vmatpush1.bf16.msra.mxu0 0
    %296 = vmatprep.subr.bf16.mxu0 0
    %297 = vmatpush1.bf16.msra.mxu0 0
    %298 = vmatprep.mubr.bf16.mxu0 0
    %299 = vmatmul.mubr.bf16.gmra.mrb[0].mxu0 %v201
    %v300 = vpop.f32.mrb[0].mxu0
    %v301 = vadd.f32 0.0, %v300
    %v302 = vpop.f32.mrb[0].mxu0
    %v303 = vpop.f32.mrb[0].mxu0
    %v304 = vpop.f32.mrb[0].mxu0
    %305 = vdwg.mxu0
    %p306 = scmp.eq.s32.totalorder 0, 0
    // Predicated region
    $region42: #{tpu_custom_call.1} parent=1 // pred_check
      %p307 = pneg %p306
    $region43: #{tpu_custom_call.1} parent=1 // pred_check_branch
      %309 = sbr.rel (%p307) target = $region45
    $region44: #{tpu_custom_call.1} parent=1 // pred_region
      %310 = vst [vmem:[#allocation2] sm:$0xff] 0.0
    $region45: #{tpu_custom_call.1} parent=1 // pred_fallthru
      _
    %v311 = vld [vmem:[#allocation2] sm:$0xff]
    %v312 = vadd.f32 %v311, %v301
    %313 = vst [vmem:[#allocation2] sm:$0xff] %v312
    // Predicated region
    $region46: #{tpu_custom_call.1} parent=1 // pred_check
      %p314 = pneg %p306
    $region47: #{tpu_custom_call.1} parent=1 // pred_check_branch
      %316 = sbr.rel (%p314) target = $region49
    $region48: #{tpu_custom_call.1} parent=1 // pred_region
      %v317 = vld [vmem:[#allocation2] sm:$0xff]
      %v318 = vld [vmem:[#allocation11] sm:$0x1]
      %v320 = vlaneseq
      %v321 = vshrl.u32 %v320, 7
      %v322 = vsub.s32 0, %v321
      %v323 = vrot.slane %v318, %v322
      %v325 = vadd.f32 %v317, %v323
      %v326 = vmul.f32 %v325, 0.5
      %v327 = vmul.f32 %v325, 0.70710677
      %v328 = verf.f32.pop %v327
      %v329 = vadd.f32 %v328, 1.0
      %v330 = vmul.f32 %v326, %v329
      %331 = vst [vmem:[#allocation12] sm:$0xff] %v330
    $region49: #{tpu_custom_call.1} parent=1 // pred_fallthru
      _
    // Predicated region
    $region50: #{tpu_custom_call.1} parent=1 // pred_check
      _
    $region51: #{tpu_custom_call.1} parent=1 // pred_check_branch
      %333 = sbr.rel (0) target = $region53
    $region52: #{tpu_custom_call.1} parent=1 // pred_region
      %s335 = ssub.s32 128, 128
      %336 = vsyncadd [#allocation5], %s335
      %s338 = sshll.u32 [#allocation12], 4
      %s339 = int_to_ptr.vmem [resolvable:$true] %s338
      %341 = dma.vmem_to_hbm [thread:$0]  %s339, 128, %s5, [#allocation5]
    $region53: #{tpu_custom_call.1} parent=1 // pred_fallthru
      _
    // Predicated region
    $region54: #{tpu_custom_call.1} parent=1 // pred_check
      _
    $region55: #{tpu_custom_call.1} parent=1 // pred_check_branch
      %343 = sbr.rel (0) target = $region57
    $region56: #{tpu_custom_call.1} parent=1 // pred_region
      %344 = dma.done [#allocation5], 128
    $region57: #{tpu_custom_call.1} parent=1 // pred_fallthru
      _
    %345 = vsyncpa [#allocation4], 1
    %346 = vsyncpa [#allocation7], 1
    %347 = vsyncpa [#allocation10], 1
    %348 = vsyncpa [#allocation5], 1

</llo_original>
